<compile_context>
chip_gen: v7x
topology: tpu7x:2x2x1
jax: 0.10.0
libtpu: 0.0.40
codegen_flags: <defaults>
</compile_context>

<pallas_src>
import jax
import jax.numpy as jnp
from jax import lax
from jax.experimental import pallas as pl
from jax.experimental.pallas import tpu as pltpu


def _choose_tile(hw, c, itemsize, block_lanes=None, block_bytes=8 * 1024 * 1024):
    """Pick (spatial tile width THW, accumulator lane width LANEW)."""
    if hw <= 128:
        # Whole spatial extent as one full-dim block (no padding, no mask).
        return hw, hw
    hw_padded = ((hw + 127) // 128) * 128
    if block_lanes is None:
        # Size the x block by bytes: ~8 MiB per block => 16 MiB double-buffered.
        block_lanes = block_bytes // max(1, c * itemsize)
        block_lanes = max(128, min(block_lanes, 32768))
    thw = max(128, (block_lanes // 128) * 128)
    thw = min(thw, hw_padded)
    return int(thw), 128


def _make_kernel(C, HW, THW, LANEW, n_hw):
    n_chunks = THW // LANEW                  # chunks per full tile
    tail_len = HW - (n_hw - 1) * THW         # valid lanes in the last tile
    tail_full = tail_len // LANEW            # full (unmasked) chunks in last tile
    tail_rem = tail_len % LANEW              # valid lanes of the partial chunk
    needs_mask = (n_hw * THW != HW)
    inv_hw = 1.0 / float(HW)
    acc_in_regs = C <= 128                   # register partials fit the vreg file

    def _fold(x_ref, sum_acc, max_acc, num_full, rem):
        """Fold `num_full` unmasked chunks plus (if rem>0) one rem-lane masked
        chunk into the running accumulators.  num_full / rem are static."""
        total = num_full + (1 if rem > 0 else 0)
        if total == 0:
            return

        valid = None
        if rem > 0:
            # Single iota, hoisted out of the chunk loop; broadcasts over C rows.
            lane = lax.broadcasted_iota(jnp.int32, (1, LANEW), 1)
            valid = lane < rem

        def chunk_vals(i, masked):
            # Per-chunk ref slice + cast: never materialize the full f32 tile.
            ck = x_ref[:, i * LANEW:(i + 1) * LANEW].astype(jnp.float32)
            if not masked:
                return ck, ck
            return jnp.where(valid, ck, 0.0), jnp.where(valid, ck, -jnp.inf)

        if acc_in_regs:
            p_sum, p_max = chunk_vals(0, masked=(0 >= num_full))
            for i in range(1, total):
                c_s, c_m = chunk_vals(i, masked=(i >= num_full))
                p_sum = p_sum + c_s
                p_max = jnp.maximum(p_max, c_m)
            sum_acc[...] = sum_acc[...] + p_sum
            max_acc[...] = jnp.maximum(max_acc[...], p_max)
        else:
            # Large C: bound live ranges by accumulating into VMEM scratch
            # per chunk (kernel is mem-bound; extra vld/vst is hidden).
            for i in range(total):
                c_s, c_m = chunk_vals(i, masked=(i >= num_full))
                sum_acc[...] = sum_acc[...] + c_s
                max_acc[...] = jnp.maximum(max_acc[...], c_m)

    def kernel(x_ref, w1_ref, w2_ref, o_ref, sum_acc, max_acc):
        # x_ref:  (C, THW)   spatial tile of one batch element (batch squeezed)
        # w1_ref: (Cr, C)    f1.weight[:, :, 0, 0]
        # w2_ref: (C, Cr)    f2.weight[:, :, 0, 0]
        # o_ref:  (C, 1)     sigmoid channel attention (written at last step)
        # sum_acc/max_acc: (C, LANEW) f32 running accumulators
        j = pl.program_id(1)

        @pl.when(j == 0)
        def _init():
            sum_acc[...] = jnp.zeros(sum_acc.shape, sum_acc.dtype)
            max_acc[...] = jnp.full(max_acc.shape, -jnp.inf, max_acc.dtype)

        if not needs_mask:
            # Every tile is full: single unmasked fast path.
            _fold(x_ref, sum_acc, max_acc, n_chunks, 0)
        elif n_hw == 1:
            # Only one (tail) tile: masking resolved fully statically.
            _fold(x_ref, sum_acc, max_acc, tail_full, tail_rem)
        else:
            @pl.when(j < n_hw - 1)
            def _full_tiles():
                _fold(x_ref, sum_acc, max_acc, n_chunks, 0)

            @pl.when(j == n_hw - 1)
            def _tail_tile():
                _fold(x_ref, sum_acc, max_acc, tail_full, tail_rem)

        @pl.when(j == n_hw - 1)
        def _finalize():
            # Final cross-lane reduce + fused MLP, once per batch element.
            avg = jnp.sum(sum_acc[...], axis=-1, keepdims=True) * inv_hw   # (C, 1)
            mx = jnp.max(max_acc[...], axis=-1, keepdims=True)             # (C, 1)
            pooled = jnp.concatenate([avg, mx], axis=-1)                   # (C, 2)
            h = jnp.dot(w1_ref[...].astype(jnp.float32), pooled,
                        preferred_element_type=jnp.float32)                # (Cr, 2)
            h = jnp.maximum(h, 0.0)
            y = jnp.dot(w2_ref[...].astype(jnp.float32), h,
                        preferred_element_type=jnp.float32)                # (C, 2)
            att = jax.nn.sigmoid(y[:, 0:1] + y[:, 1:2])                    # (C, 1)
            o_ref[...] = att.astype(o_ref.dtype)

    return kernel


def channel_attention(x, w1, w2, *, block_lanes=None):
    """x: (B, C, H, W); w1: (Cr, C); w2: (C, Cr). Returns (B, C, 1, 1)."""
    B, C, H, W = x.shape
    Cr = w1.shape[0]
    assert w1.shape == (Cr, C) and w2.shape == (C, Cr)

    HW = H * W
    x_flat = x.reshape(B, C, HW)          # contiguous NCHW reshape, no transpose

    itemsize = x_flat.dtype.itemsize
    thw, lanew = _choose_tile(HW, C, itemsize, block_lanes)
    n_hw = pl.cdiv(HW, thw)

    kernel = _make_kernel(C=C, HW=HW, THW=thw, LANEW=lanew, n_hw=n_hw)

    w_bytes = w1.size * w1.dtype.itemsize + w2.size * w2.dtype.itemsize
    cost = pl.CostEstimate(
        flops=int(2 * B * C * HW + 16 * B * C * Cr),
        transcendentals=int(B * C),
        bytes_accessed=int(x_flat.size * itemsize + w_bytes + B * C * itemsize),
    )

    # Explicit scoped-VMEM budget: covers double-buffered x blocks + weights +
    # accumulators, raised above v5e's 16 MiB default but kept <= 48 MiB so it
    # stays comfortable on v7x's 64 MiB per-TensorCore VMEM.
    vmem_needed = (2 * C * thw * itemsize        # double-buffered x blocks
                   + 2 * w_bytes                 # double-buffered weights
                   + 2 * C * lanew * 4           # f32 accumulator scratch
                   + 2 * C * itemsize)           # output block
    vmem_limit = int(min(48 * 2**20, max(32 * 2**20, vmem_needed + 8 * 2**20)))

    out = pl.pallas_call(
        kernel,
        out_shape=jax.ShapeDtypeStruct((B, C, 1), x.dtype),
        grid_spec=pltpu.PrefetchScalarGridSpec(
            num_scalar_prefetch=0,
            grid=(B, n_hw),
            in_specs=[
                pl.BlockSpec((None, C, thw), lambda b, j: (b, 0, j)),
                pl.BlockSpec((Cr, C), lambda b, j: (0, 0)),
                pl.BlockSpec((C, Cr), lambda b, j: (0, 0)),
            ],
            out_specs=pl.BlockSpec((None, C, 1), lambda b, j: (b, 0, 0)),
            scratch_shapes=[
                pltpu.VMEM((C, lanew), jnp.float32),   # running sum
                pltpu.VMEM((C, lanew), jnp.float32),   # running max
            ],
        ),
        compiler_params=pltpu.CompilerParams(
            dimension_semantics=("parallel", "arbitrary"),
            vmem_limit_bytes=vmem_limit,
        ),
        cost_estimate=cost,
    )(x_flat, w1, w2)

    return out.reshape(B, C, 1, 1)


def _reference(x, w1, w2):
    # Pure-JAX reference mirroring the PyTorch forward.
    avg = jnp.mean(x, axis=(2, 3))  # (B, C)
    mx = jnp.max(x, axis=(2, 3))    # (B, C)

    def mlp(v):
        h = jnp.maximum(v @ w1.T, 0.0)  # (B, Cr)
        return h @ w2.T                 # (B, C)

    return jax.nn.sigmoid(mlp(avg) + mlp(mx))[:, :, None, None]


if __name__ == "__main__":
    key = jax.random.PRNGKey(0)
    # HW = 400 is NOT a multiple of 128: exercises the static tail-masking path.
    B, C, H, W = 2, 64, 20, 20
    ratio = 16
    Cr = C // ratio  # 4

    kx, k1, k2 = jax.random.split(key, 3)
    x = jax.random.normal(kx, (B, C, H, W), dtype=jnp.float32)
    # Deterministic synthetic weights for the two 1x1 convs (bias=False).
    w1 = jax.random.normal(k1, (Cr, C), dtype=jnp.float32) * 0.1  # f1.weight[:, :, 0, 0]
    w2 = jax.random.normal(k2, (C, Cr), dtype=jnp.float32) * 0.1  # f2.weight[:, :, 0, 0]

    ref = _reference(x, w1, w2)

    # 1) Auto-sized spatial tile: single padded tile, statically masked tail.
    out_a = channel_attention(x, w1, w2)
    jax.block_until_ready(out_a)
    assert out_a.shape == (B, C, 1, 1)
    assert jnp.allclose(out_a, ref, atol=1e-5, rtol=1e-5), "mismatch (auto tile)"

    # 2) Forced 128-lane tile -> multiple grid steps: exercises the unmasked
    #    fast path for full tiles + masked last-step tail + accumulators.
    out_b = channel_attention(x, w1, w2, block_lanes=128)
    jax.block_until_ready(out_b)
    assert jnp.allclose(out_b, ref, atol=1e-5, rtol=1e-5), "mismatch (tiled)"

    # 3) bf16 input: per-chunk upcast streaming path (no full-tile f32 temp).
    xb = x.astype(jnp.bfloat16)
    ref_b = _reference(xb.astype(jnp.float32), w1, w2)
    out_c = channel_attention(xb, w1, w2, block_lanes=128)
    jax.block_until_ready(out_c)
    assert jnp.allclose(out_c.astype(jnp.float32), ref_b,
                        atol=2e-2, rtol=2e-2), "mismatch (bf16)"

    print("KERNEL_OK")
</pallas_src>

<mosaic_0001>
module attributes {stable_mosaic.version = 11 : i64} {
  func.func @kernel(%arg0: i32, %arg1: i32, %arg2: memref<1x64x512xf32, #tpu.memory_space<vmem>>, %arg3: memref<4x64xf32, #tpu.memory_space<vmem>>, %arg4: memref<64x4xf32, #tpu.memory_space<vmem>>, %arg5: memref<1x64x1xf32, #tpu.memory_space<vmem>>, %arg6: memref<64x128xf32, #tpu.memory_space<vmem>>, %arg7: memref<64x128xf32, #tpu.memory_space<vmem>>) attributes {dimension_semantics = [#tpu.dimension_semantics<parallel>, #tpu.dimension_semantics<arbitrary>], iteration_bounds = array<i64: 2, 1>, scalar_prefetch = 0 : i64, scratch_operands = 2 : i64, tpu.core_type = #tpu.core_type<tc>, window_params = [{transform_indices = @transform_0, window_bounds = array<i64: 1, 64, 512>}, {pipeline_mode = #tpu.pipeline_mode<synchronous>, transform_indices = @transform_1, window_bounds = array<i64: 4, 64>}, {pipeline_mode = #tpu.pipeline_mode<synchronous>, transform_indices = @transform_2, window_bounds = array<i64: 64, 4>}, {transform_indices = @transform_3, window_bounds = array<i64: 1, 64, 1>}]} {
    %c0_i32 = arith.constant 0 : i32
    %0 = arith.cmpi eq, %arg1, %c0_i32 : i32
    %1 = arith.extui %0 : i1 to i32
    %c0_i32_0 = arith.constant 0 : i32
    %2 = arith.cmpi ne, %1, %c0_i32_0 : i32
    scf.if %2 {
      %cst_20 = arith.constant 0.000000e+00 : f32
      %37 = vector.broadcast %cst_20 : f32 to vector<64x128xf32>
      %c0_21 = arith.constant 0 : index
      %c0_22 = arith.constant 0 : index
      %38 = vector.load %arg6[%c0_21, %c0_22] : memref<64x128xf32, #tpu.memory_space<vmem>>, vector<64x128xf32>
      tpu.vector_store %arg6[%c0_21, %c0_22], %37 {strides = array<i32>} : memref<64x128xf32, #tpu.memory_space<vmem>>, vector<64x128xf32>,
      %cst_23 = arith.constant 0xFF800000 : f32
      %39 = vector.broadcast %cst_23 : f32 to vector<64x128xf32>
      %c0_24 = arith.constant 0 : index
      %c0_25 = arith.constant 0 : index
      %40 = vector.load %arg7[%c0_24, %c0_25] : memref<64x128xf32, #tpu.memory_space<vmem>>, vector<64x128xf32>
      tpu.vector_store %arg7[%c0_24, %c0_25], %39 {strides = array<i32>} : memref<64x128xf32, #tpu.memory_space<vmem>>, vector<64x128xf32>,
    } else {
    }
    %3 = tpu.iota {dimensions = array<i32: 1>} : vector<1x128xi32>
    %c16_i32 = arith.constant 16 : i32
    %4 = vector.broadcast %c16_i32 : i32 to vector<1x128xi32>
    %5 = arith.cmpi slt, %3, %4 : vector<1x128xi32>
    %c0 = arith.constant 0 : index
    %c0_1 = arith.constant 0 : index
    %c0_2 = arith.constant 0 : index
    %6 = vector.load %arg2[%c0, %c0_1, %c0_2] : memref<1x64x512xf32, #tpu.memory_space<vmem>>, vector<1x64x128xf32>
    %7 = vector.shape_cast %6 : vector<1x64x128xf32> to vector<64x128xf32>
    %c0_3 = arith.constant 0 : index
    %c0_4 = arith.constant 0 : index
    %c128 = arith.constant 128 : index
    %8 = vector.load %arg2[%c0_3, %c0_4, %c128] : memref<1x64x512xf32, #tpu.memory_space<vmem>>, vector<1x64x128xf32>
    %9 = vector.shape_cast %8 : vector<1x64x128xf32> to vector<64x128xf32>
    %10 = arith.addf %7, %9 : vector<64x128xf32>
    %11 = arith.maximumf %7, %9 : vector<64x128xf32>
    %c0_5 = arith.constant 0 : index
    %c0_6 = arith.constant 0 : index
    %c256 = arith.constant 256 : index
    %12 = vector.load %arg2[%c0_5, %c0_6, %c256] : memref<1x64x512xf32, #tpu.memory_space<vmem>>, vector<1x64x128xf32>
    %13 = vector.shape_cast %12 : vector<1x64x128xf32> to vector<64x128xf32>
    %14 = arith.addf %10, %13 : vector<64x128xf32>
    %15 = arith.maximumf %11, %13 : vector<64x128xf32>
    %c0_7 = arith.constant 0 : index
    %c0_8 = arith.constant 0 : index
    %c384 = arith.constant 384 : index
    %16 = vector.load %arg2[%c0_7, %c0_8, %c384] : memref<1x64x512xf32, #tpu.memory_space<vmem>>, vector<1x64x128xf32>
    %17 = vector.shape_cast %16 : vector<1x64x128xf32> to vector<64x128xf32>
    %cst = arith.constant 0.000000e+00 : f32
    %18 = vector.shape_cast %5 : vector<1x128xi1> to vector<1x128xi1>
    %19 = vector.broadcast %18 : vector<1x128xi1> to vector<64x128xi1>
    %20 = vector.broadcast %cst : f32 to vector<64x128xf32>
    %21 = arith.select %19, %17, %20 : vector<64x128xi1>, vector<64x128xf32>
    %cst_9 = arith.constant 0xFF800000 : f32
    %22 = vector.shape_cast %5 : vector<1x128xi1> to vector<1x128xi1>
    %23 = vector.broadcast %22 : vector<1x128xi1> to vector<64x128xi1>
    %24 = vector.broadcast %cst_9 : f32 to vector<64x128xf32>
    %25 = arith.select %23, %17, %24 : vector<64x128xi1>, vector<64x128xf32>
    %26 = arith.addf %14, %21 : vector<64x128xf32>
    %27 = arith.maximumf %15, %25 : vector<64x128xf32>
    %c0_10 = arith.constant 0 : index
    %c0_11 = arith.constant 0 : index
    %28 = vector.load %arg6[%c0_10, %c0_11] : memref<64x128xf32, #tpu.memory_space<vmem>>, vector<64x128xf32>
    %29 = arith.addf %28, %26 : vector<64x128xf32>
    %c0_12 = arith.constant 0 : index
    %c0_13 = arith.constant 0 : index
    %30 = vector.load %arg6[%c0_12, %c0_13] : memref<64x128xf32, #tpu.memory_space<vmem>>, vector<64x128xf32>
    tpu.vector_store %arg6[%c0_12, %c0_13], %29 {strides = array<i32>} : memref<64x128xf32, #tpu.memory_space<vmem>>, vector<64x128xf32>,
    %c0_14 = arith.constant 0 : index
    %c0_15 = arith.constant 0 : index
    %31 = vector.load %arg7[%c0_14, %c0_15] : memref<64x128xf32, #tpu.memory_space<vmem>>, vector<64x128xf32>
    %32 = arith.maximumf %31, %27 : vector<64x128xf32>
    %c0_16 = arith.constant 0 : index
    %c0_17 = arith.constant 0 : index
    %33 = vector.load %arg7[%c0_16, %c0_17] : memref<64x128xf32, #tpu.memory_space<vmem>>, vector<64x128xf32>
    tpu.vector_store %arg7[%c0_16, %c0_17], %32 {strides = array<i32>} : memref<64x128xf32, #tpu.memory_space<vmem>>, vector<64x128xf32>,
    %c0_i32_18 = arith.constant 0 : i32
    %34 = arith.cmpi eq, %arg1, %c0_i32_18 : i32
    %35 = arith.extui %34 : i1 to i32
    %c0_i32_19 = arith.constant 0 : i32
    %36 = arith.cmpi ne, %35, %c0_i32_19 : i32
    scf.if %36 {
      %c0_20 = arith.constant 0 : index
      %c0_21 = arith.constant 0 : index
      %37 = vector.load %arg6[%c0_20, %c0_21] : memref<64x128xf32, #tpu.memory_space<vmem>>, vector<64x128xf32>
      %cst_22 = arith.constant dense<0.000000e+00> : vector<64xf32>
      %38 = vector.multi_reduction <add>, %37, %cst_22 [1] : vector<64x128xf32> to vector<64xf32>
      %39 = vector.shape_cast %38 : vector<64xf32> to vector<64x1xf32>
      %cst_23 = arith.constant 2.500000e-03 : f32
      %40 = vector.broadcast %cst_23 : f32 to vector<64x1xf32>
      %41 = arith.mulf %39, %40 : vector<64x1xf32>
      %c0_24 = arith.constant 0 : index
      %c0_25 = arith.constant 0 : index
      %42 = vector.load %arg7[%c0_24, %c0_25] : memref<64x128xf32, #tpu.memory_space<vmem>>, vector<64x128xf32>
      %cst_26 = arith.constant dense<0xFF800000> : vector<64xf32>
      %43 = vector.multi_reduction <maximumf>, %42, %cst_26 [1] : vector<64x128xf32> to vector<64xf32>
      %44 = vector.shape_cast %43 : vector<64xf32> to vector<64x1xf32>
      %45 = tpu.concatenate %41, %44 in 1 : vector<64x1xf32>, vector<64x1xf32> -> vector<64x2xf32>
      %c0_27 = arith.constant 0 : index
      %c0_28 = arith.constant 0 : index
      %46 = vector.load %arg3[%c0_27, %c0_28] : memref<4x64xf32, #tpu.memory_space<vmem>>, vector<4x64xf32>
      %cst_29 = arith.constant dense<0.000000e+00> : vector<4x2xf32>
      %47 = tpu.matmul %46, %45, %cst_29 {dimension_numbers = #tpu.dot_dimension_numbers<[1], [0], [0], [1], [0, 0, 1, 1], [], []>} : vector<4x64xf32>, vector<64x2xf32>, vector<4x2xf32> -> vector<4x2xf32>
      %cst_30 = arith.constant 0.000000e+00 : f32
      %48 = vector.broadcast %cst_30 : f32 to vector<4x2xf32>
      %49 = arith.maximumf %47, %48 : vector<4x2xf32>
      %c0_31 = arith.constant 0 : index
      %c0_32 = arith.constant 0 : index
      %50 = vector.load %arg4[%c0_31, %c0_32] : memref<64x4xf32, #tpu.memory_space<vmem>>, vector<64x4xf32>
      %cst_33 = arith.constant dense<0.000000e+00> : vector<64x2xf32>
      %51 = tpu.matmul %50, %49, %cst_33 {dimension_numbers = #tpu.dot_dimension_numbers<[1], [0], [0], [1], [0, 0, 1, 1], [], []>} : vector<64x4xf32>, vector<4x2xf32>, vector<64x2xf32> -> vector<64x2xf32>
      %52 = vector.extract_strided_slice %51 {offsets = [0, 0], sizes = [64, 1], strides = [1, 1]} : vector<64x2xf32> to vector<64x1xf32>
      %53 = vector.extract_strided_slice %51 {offsets = [0, 1], sizes = [64, 1], strides = [1, 1]} : vector<64x2xf32> to vector<64x1xf32>
      %54 = arith.addf %52, %53 : vector<64x1xf32>
      %55 = arith.negf %54 : vector<64x1xf32>
      %56 = math.exp %55 : vector<64x1xf32>
      %cst_34 = arith.constant 1.000000e+00 : f32
      %57 = vector.broadcast %cst_34 : f32 to vector<64x1xf32>
      %58 = arith.addf %57, %56 : vector<64x1xf32>
      %59 = arith.divf %57, %58 : vector<64x1xf32>
      %c0_35 = arith.constant 0 : index
      %c0_36 = arith.constant 0 : index
      %c0_37 = arith.constant 0 : index
      %60 = vector.load %arg5[%c0_35, %c0_36, %c0_37] : memref<1x64x1xf32, #tpu.memory_space<vmem>>, vector<1x64x1xf32>
      %61 = vector.shape_cast %60 : vector<1x64x1xf32> to vector<64x1xf32>
      %62 = vector.shape_cast %59 : vector<64x1xf32> to vector<1x64x1xf32>
      tpu.vector_store %arg5[%c0_35, %c0_36, %c0_37], %62 {strides = array<i32>} : memref<1x64x1xf32, #tpu.memory_space<vmem>>, vector<1x64x1xf32>,
    } else {
    }
    return
  }
  func.func @transform_0(%arg0: i32, %arg1: i32) -> (i32, i32, i32) {
    %c0_i32 = arith.constant 0 : i32
    %c0_i32_0 = arith.constant 0 : i32
    return %arg0, %c0_i32, %arg1 : i32, i32, i32
  }
  func.func @transform_1(%arg0: i32, %arg1: i32) -> (i32, i32) {
    %c0_i32 = arith.constant 0 : i32
    %c0_i32_0 = arith.constant 0 : i32
    %c0_i32_1 = arith.constant 0 : i32
    return %c0_i32, %c0_i32_0 : i32, i32
  }
  func.func @transform_2(%arg0: i32, %arg1: i32) -> (i32, i32) {
    %c0_i32 = arith.constant 0 : i32
    %c0_i32_0 = arith.constant 0 : i32
    %c0_i32_1 = arith.constant 0 : i32
    return %c0_i32, %c0_i32_0 : i32, i32
  }
  func.func @transform_3(%arg0: i32, %arg1: i32) -> (i32, i32, i32) {
    %c0_i32 = arith.constant 0 : i32
    %c0_i32_0 = arith.constant 0 : i32
    %c0_i32_1 = arith.constant 0 : i32
    return %arg0, %c0_i32, %c0_i32_0 : i32, i32, i32
  }
}

</mosaic_0001>

<llo_original>
// kernel: tpu_custom_call.1
$region0: #{tpu_custom_call.1}
  #allocation0 [shape = 'u32[]', space=smem, size = 0x4, offset = 0x4, fixed_abs, tag = 'smem constant byte address 0x4 - core index']
  #allocation1 [shape = 'u32[144,128]{1,0:T(1,128)}', space=vmem, size = 0x12000, scoped, tag = 'internal scratch']
  #allocation2 [shape = 'f32[64,128]{1,0:T(8,128)}', space=vmem, size = 0x8000, scoped, tag = 'scratch operand']
  #allocation3 [shape = 'f32[64,128]{1,0:T(8,128)}', space=vmem, size = 0x8000, scoped, tag = 'scratch operand']
  %s0 = inlined_call_operand.hbm [shape: f32[2,64,400], index: 0, kind: input, shape index: {}]
  %s1 = inlined_call_operand.vmem [shape: f32[4,64], index: 1, kind: input, shape index: {}]
  %s2 = inlined_call_operand.vmem [shape: f32[64,4], index: 2, kind: input, shape index: {}]
  %s3 = inlined_call_operand.vmem [shape: f32[2,64,1], index: 3, kind: output, shape index: {}]
  %s4 = sld [smem:[#allocation0]]
  $region57: #{tpu_custom_call.1} parent=0
    _
  %s6 = ssub.s32 1, %s4
  %s7 = scalar_select 0, %s6, %s4
  $region1: #{tpu_custom_call.1} parent=0
    #allocation4 [shape = 'u8[262144]{0}', space=vmem, size = 0x40000, scoped, tag = 'input window, operand 0']
    #allocation5 [shape = 's32[2]{0}', space=sflag, size = 0x8, scoped, tag = 'scoped memory for tpu_custom_call.1']
    %8 = vsyncpa [#allocation5], 0
    %s9 = scalar_lea.sflag [#allocation5], 1
    %10 = vsyncpa %s9, 0
    loop: start=0, step=1, limit=4
    $region2: #{tpu_custom_call.1} parent=1 // loop_pre_header
      _
    $region3: #{tpu_custom_call.1} parent=1 // loop_header
      %s12 = sphi 0, %s16
      %p13 = scmp.ge.s32.totalorder %s12, 4
      %s19 = sphi 0, %s31
      %s20 = sphi 0, %s27
      %s21 = sphi 0, %s19
      %s22 = sphi 0, %s20
      %s23 = sphi 0, %s21
      %s24 = sphi 0, %s22
      %s36 = sphi 0, %s38
      %s39 = sphi 0, %s36
      %s40 = sphi 0, %s39
      %s56 = sphi 0, %s40
      %s60 = sphi 0, %s60
      %s62 = sphi 0, %s60
      %s63 = sphi 0, %s62
      %s77 = sphi 0, %s63
      %s81 = sphi 0, %s81
      %s83 = sphi 0, %s81
      %s84 = sphi 0, %s83
      %s98 = sphi 0, %s84
      %s104 = sphi 0, %s106
      %s107 = sphi 0, %s104
      %s108 = sphi 0, %s107
      %s124 = sphi 0, %s108
    $region4: #{tpu_custom_call.1} parent=1 // loop_header_branch
      %15 = sbr.rel (%p13) target = $region8
    $region5: #{tpu_custom_call.1} parent=1 // loop_body
      %s17 = ssub.s32 %s12, 1
      %s18 = ssub.s32 %s12, 2
      %s25 = sadd.s32 1, %s20
      %p26 = scmp.ge.s32.totalorder %s25, 1
      %s27 = scalar_select %p26, 0, %s25
      %s28 = sadd.s32 1, %s19
      %s29 = scalar_select %p26, %s28, %s19
      %p30 = scmp.ge.s32.totalorder %s29, 2
      %s31 = scalar_select %p30, 0, %s29
      %s32 = ssub.s32 %s19, %s31
      %s33 = ssub.s32 %s20, %s27
      %s34 = sor.u32 %s32, %s33
      %p35 = scmp.eq.s32.totalorder %s34, 0
      %s37 = sadd.s32 %s36, 1
      %s38 = scalar_select %p35, %s36, %s37
      %p41 = pneg %p35
      %p42 = scmp.eq.s32.totalorder %s12, 1
      %p43 = por %p41, %p42
      %p44 = scmp.ne.s32.totalorder %s36, %s39
      %p45 = scmp.eq.s32.totalorder %s12, 0
      %p46 = por %p44, %p45
      %p47 = scmp.ne.s32.totalorder %s36, %s39
      %p48 = scmp.eq.s32.totalorder %s17, 1
      %p49 = por %p47, %p48
      %p50 = scmp.ne.s32.totalorder %s39, %s40
      %p51 = scmp.eq.s32.totalorder %s17, 0
      %p52 = por %p50, %p51
      %p53 = scmp.ne.s32.totalorder %s39, %s40
      %p54 = scmp.eq.s32.totalorder %s18, 1
      %p55 = por %p53, %p54
      %p57 = scmp.ne.s32.totalorder %s40, %s56
      %p58 = scmp.eq.s32.totalorder %s18, 0
      %p59 = por %p57, %p58
      %s61 = sadd.s32 %s60, 1
      %p64 = scmp.eq.s32.totalorder %s12, 1
      %p65 = scmp.ne.s32.totalorder %s60, %s62
      %p66 = scmp.eq.s32.totalorder %s12, 0
      %p67 = por %p65, %p66
      %p68 = scmp.ne.s32.totalorder %s60, %s62
      %p69 = scmp.eq.s32.totalorder %s17, 1
      %p70 = por %p68, %p69
      %p71 = scmp.ne.s32.totalorder %s62, %s63
      %p72 = scmp.eq.s32.totalorder %s17, 0
      %p73 = por %p71, %p72
      %p74 = scmp.ne.s32.totalorder %s62, %s63
      %p75 = scmp.eq.s32.totalorder %s18, 1
      %p76 = por %p74, %p75
      %p78 = scmp.ne.s32.totalorder %s63, %s77
      %p79 = scmp.eq.s32.totalorder %s18, 0
      %p80 = por %p78, %p79
      %s82 = sadd.s32 %s81, 1
      %p85 = scmp.eq.s32.totalorder %s12, 1
      %p86 = scmp.ne.s32.totalorder %s81, %s83
      %p87 = scmp.eq.s32.totalorder %s12, 0
      %p88 = por %p86, %p87
      %p89 = scmp.ne.s32.totalorder %s81, %s83
      %p90 = scmp.eq.s32.totalorder %s17, 1
      %p91 = por %p89, %p90
      %p92 = scmp.ne.s32.totalorder %s83, %s84
      %p93 = scmp.eq.s32.totalorder %s17, 0
      %p94 = por %p92, %p93
      %p95 = scmp.ne.s32.totalorder %s83, %s84
      %p96 = scmp.eq.s32.totalorder %s18, 1
      %p97 = por %p95, %p96
      %p99 = scmp.ne.s32.totalorder %s84, %s98
      %p100 = scmp.eq.s32.totalorder %s18, 0
      %p101 = por %p99, %p100
      %s102 = ssub.s32 %s19, %s31
      %p103 = scmp.eq.s32.totalorder %s102, 0
      %s105 = sadd.s32 %s104, 1
      %s106 = scalar_select %p103, %s104, %s105
      %p109 = pneg %p103
      %p110 = scmp.eq.s32.totalorder %s12, 1
      %p111 = por %p109, %p110
      %p112 = scmp.ne.s32.totalorder %s104, %s107
      %p113 = scmp.eq.s32.totalorder %s12, 0
      %p114 = por %p112, %p113
      %p115 = scmp.ne.s32.totalorder %s104, %s107
      %p116 = scmp.eq.s32.totalorder %s17, 1
      %p117 = por %p115, %p116
      %p118 = scmp.ne.s32.totalorder %s107, %s108
      %p119 = scmp.eq.s32.totalorder %s17, 0
      %p120 = por %p118, %p119
      %p121 = scmp.ne.s32.totalorder %s107, %s108
      %p122 = scmp.eq.s32.totalorder %s18, 1
      %p123 = por %p121, %p122
      %p125 = scmp.ne.s32.totalorder %s108, %s124
      %p126 = scmp.eq.s32.totalorder %s18, 0
      %p127 = por %p125, %p126
      %p128 = scmp.le.s32.totalorder 1, %s12
      %p129 = scmp.lt.s32.totalorder %s12, 3
      %p130 = pnand %p128, %p129
      %p131 = pneg %p130
      // Predicated region
      $region9: #{tpu_custom_call.1} parent=5 // pred_check
        _
      $region10: #{tpu_custom_call.1} parent=5 // pred_check_branch
        %133 = sbr.rel (%p130) target = $region12
      $region11: #{tpu_custom_call.1} parent=5 // pred_region
        %s134 = ssub.s32 %s12, 1
        // Predicated region
        $region13: #{tpu_custom_call.1} parent=11 // pred_check
          %p135 = pneg %p73
        $region14: #{tpu_custom_call.1} parent=11 // pred_check_branch
          %137 = sbr.rel (%p135) target = $region16
        $region15: #{tpu_custom_call.1} parent=11 // pred_region
          _
        $region16: #{tpu_custom_call.1} parent=11 // pred_fallthru
          _
        // Predicated region
        $region17: #{tpu_custom_call.1} parent=11 // pred_check
          %p138 = pneg %p94
        $region18: #{tpu_custom_call.1} parent=11 // pred_check_branch
          %140 = sbr.rel (%p138) target = $region20
        $region19: #{tpu_custom_call.1} parent=11 // pred_region
          _
        $region20: #{tpu_custom_call.1} parent=11 // pred_fallthru
          _
      $region12: #{tpu_custom_call.1} parent=5 // pred_fallthru
        _
      %p141 = scmp.lt.s32.totalorder %s12, 2
      // Predicated region
      $region21: #{tpu_custom_call.1} parent=5 // pred_check
        %p142 = pneg %p141
      $region22: #{tpu_custom_call.1} parent=5 // pred_check_branch
        %144 = sbr.rel (%p142) target = $region24
      $region23: #{tpu_custom_call.1} parent=5 // pred_region
        // Predicated region
        $region25: #{tpu_custom_call.1} parent=23 // pred_check
          %p145 = pneg %p46
        $region26: #{tpu_custom_call.1} parent=23 // pred_check_branch
          %147 = sbr.rel (%p145) target = $region28
        $region27: #{tpu_custom_call.1} parent=23 // pred_region
          %s148 = sand.u32 %s36, 1
          %s149 = scalar_lea.sflag [#allocation5], %s148
          %s150 = sand.u32 %s36, 1
          %s151 = smul.addr %s150, 256
          %s152 = scalar_lea.vmem [#allocation4], %s151
          %s153 = smul.u32 4, %s20
          %s155 = ssub.s32 4096, 4096
          %156 = vsyncadd %s149, %s155
          %s157 = smul.addr %s19, 32
          %s158 = sadd.s32 %s153, %s157
          %s159 = smul.addr %s158, 128
          %s160 = scalar_lea.hbm %s0, %s159
          %s161 = sshll.u32 %s152, 4
          %s162 = int_to_ptr.vmem [resolvable:$true] %s161
          %167 = dma.hbm_to_vmem [thread:$0]  %s160, 4096, %s162, %s149, 512, 512, 32
        $region28: #{tpu_custom_call.1} parent=23 // pred_fallthru
          _
      $region24: #{tpu_custom_call.1} parent=5 // pred_fallthru
        _
      %p168 = scmp.le.s32.totalorder 1, %s12
      %p169 = scmp.lt.s32.totalorder %s12, 3
      %p170 = pnand %p168, %p169
      %p171 = pneg %p170
      // Predicated region
      $region29: #{tpu_custom_call.1} parent=5 // pred_check
        _
      $region30: #{tpu_custom_call.1} parent=5 // pred_check_branch
        %173 = sbr.rel (%p170) target = $region32
      $region31: #{tpu_custom_call.1} parent=5 // pred_region
        %s174 = ssub.s32 %s12, 1
        %s175 = sand.u32 %s39, 1
        %s176 = scalar_lea.sflag [#allocation5], %s175
        %s177 = sand.u32 %s39, 1
        %s178 = smul.addr %s177, 256
        %s179 = scalar_lea.vmem [#allocation4], %s178
        // Predicated region
        $region33: #{tpu_custom_call.1} parent=31 // pred_check
          %p180 = pneg %p52
        $region34: #{tpu_custom_call.1} parent=31 // pred_check_branch
          %182 = sbr.rel (%p180) target = $region36
        $region35: #{tpu_custom_call.1} parent=31 // pred_region
          %183 = dma.done %s176, 4096
        $region36: #{tpu_custom_call.1} parent=31 // pred_fallthru
          _
        %s184 = sand.u32 %s39, 1
        %s185 = scalar_lea.sflag [#allocation5], %s184
        %s186 = sand.u32 %s39, 1
        %s187 = smul.addr %s186, 256
        %s188 = scalar_lea.vmem [#allocation4], %s187
        %p189 = pneg %p52
        %p190 = pneg %p49
        %p191 = pneg %p73
        %p192 = pneg %p70
        %p193 = pneg %p94
        %p194 = pneg %p91
        %p195 = pneg %p120
        %p196 = pneg %p117
        %p197 = scmp.lt.s32.totalorder %s21, 1
        %s198 = scalar_select %p197, %s21, 1
        %s199 = smul.addr %s198, 8
        %s200 = smul.addr %s199, 8
        %s201 = scalar_lea.vmem %s3, %s200
        %s202 = smul.u32 4, %s22
        %p203 = scmp.lt.s32.totalorder %s21, 1
        %s204 = scalar_select %p203, %s21, 1
        %s205 = smul.addr %s204, 8
        %s206 = smul.addr %s205, 8
        %s207 = scalar_lea.vmem %s3, %s206
        %p208 = scmp.eq.s32.totalorder %s22, 0
        // Predicated region
        $region37: #{tpu_custom_call.1} parent=31 // pred_check
          %p209 = pneg %p208
        $region38: #{tpu_custom_call.1} parent=31 // pred_check_branch
          %211 = sbr.rel (%p209) target = $region40
        $region39: #{tpu_custom_call.1} parent=31 // pred_region
          %212 = vst [vmem:[#allocation2] sm:$0xff] 0.0
          %213 = vst [vmem:[#allocation2 + $0x8] sm:$0xff] 0.0
          %214 = vst [vmem:[#allocation2 + $0x10] sm:$0xff] 0.0
          %215 = vst [vmem:[#allocation2 + $0x18] sm:$0xff] 0.0
          %216 = vst [vmem:[#allocation2 + $0x20] sm:$0xff] 0.0
          %217 = vst [vmem:[#allocation2 + $0x28] sm:$0xff] 0.0
          %218 = vst [vmem:[#allocation2 + $0x30] sm:$0xff] 0.0
          %219 = vst [vmem:[#allocation2 + $0x38] sm:$0xff] 0.0
          %220 = vst [vmem:[#allocation3] sm:$0xff] -inf
          %221 = vst [vmem:[#allocation3 + $0x8] sm:$0xff] -inf
          %222 = vst [vmem:[#allocation3 + $0x10] sm:$0xff] -inf
          %223 = vst [vmem:[#allocation3 + $0x18] sm:$0xff] -inf
          %224 = vst [vmem:[#allocation3 + $0x20] sm:$0xff] -inf
          %225 = vst [vmem:[#allocation3 + $0x28] sm:$0xff] -inf
          %226 = vst [vmem:[#allocation3 + $0x30] sm:$0xff] -inf
          %227 = vst [vmem:[#allocation3 + $0x38] sm:$0xff] -inf
        $region40: #{tpu_custom_call.1} parent=31 // pred_fallthru
          _
        %v228 = vlaneseq
        %v229 = vand.u32 %v228, 127
        %vm230 = vcmp.lt.s32.totalorder %v229, 16
        %v231 = vld [vmem:[%s179] sm:$0xff]
        %v232 = vld [vmem:[%s179 + $0x20] sm:$0xff]
        %v233 = vld [vmem:[%s179 + $0x40] sm:$0xff]
        %v234 = vld [vmem:[%s179 + $0x60] sm:$0xff]
        %v235 = vld [vmem:[%s179 + $0x80] sm:$0xff]
        %v236 = vld [vmem:[%s179 + $0xa0] sm:$0xff]
        %v237 = vld [vmem:[%s179 + $0xc0] sm:$0xff]
        %v238 = vld [vmem:[%s179 + $0xe0] sm:$0xff]
        %v239 = vld [vmem:[%s179 + $0x8] sm:$0xff]
        %v240 = vld [vmem:[%s179 + $0x28] sm:$0xff]
        %v241 = vld [vmem:[%s179 + $0x48] sm:$0xff]
        %v242 = vld [vmem:[%s179 + $0x68] sm:$0xff]
        %v243 = vld [vmem:[%s179 + $0x88] sm:$0xff]
        %v244 = vld [vmem:[%s179 + $0xa8] sm:$0xff]
        %v245 = vld [vmem:[%s179 + $0xc8] sm:$0xff]
        %v246 = vld [vmem:[%s179 + $0xe8] sm:$0xff]
        %v247 = vadd.f32 %v231, %v239
        %v248 = vadd.f32 %v232, %v240
        %v249 = vadd.f32 %v233, %v241
        %v250 = vadd.f32 %v234, %v242
        %v251 = vadd.f32 %v235, %v243
        %v252 = vadd.f32 %v236, %v244
        %v253 = vadd.f32 %v237, %v245
        %v254 = vadd.f32 %v238, %v246
        %v255 = vmax.f32 %v231, %v239
        %v256 = vmax.f32 %v232, %v240
        %v257 = vmax.f32 %v233, %v241
        %v258 = vmax.f32 %v234, %v242
        %v259 = vmax.f32 %v235, %v243
        %v260 = vmax.f32 %v236, %v244
        %v261 = vmax.f32 %v237, %v245
        %v262 = vmax.f32 %v238, %v246
        %v263 = vld [vmem:[%s179 + $0x10] sm:$0xff]
        %v264 = vld [vmem:[%s179 + $0x30] sm:$0xff]
        %v265 = vld [vmem:[%s179 + $0x50] sm:$0xff]
        %v266 = vld [vmem:[%s179 + $0x70] sm:$0xff]
        %v267 = vld [vmem:[%s179 + $0x90] sm:$0xff]
        %v268 = vld [vmem:[%s179 + $0xb0] sm:$0xff]
        %v269 = vld [vmem:[%s179 + $0xd0] sm:$0xff]
        %v270 = vld [vmem:[%s179 + $0xf0] sm:$0xff]
        %v271 = vadd.f32 %v247, %v263
        %v272 = vadd.f32 %v248, %v264
        %v273 = vadd.f32 %v249, %v265
        %v274 = vadd.f32 %v250, %v266
        %v275 = vadd.f32 %v251, %v267
        %v276 = vadd.f32 %v252, %v268
        %v277 = vadd.f32 %v253, %v269
        %v278 = vadd.f32 %v254, %v270
        %v279 = vmax.f32 %v255, %v263
        %v280 = vmax.f32 %v256, %v264
        %v281 = vmax.f32 %v257, %v265
        %v282 = vmax.f32 %v258, %v266
        %v283 = vmax.f32 %v259, %v267
        %v284 = vmax.f32 %v260, %v268
        %v285 = vmax.f32 %v261, %v269
        %v286 = vmax.f32 %v262, %v270
        %v287 = vld [vmem:[%s179 + $0x18] sm:$0xff]
        %v288 = vld [vmem:[%s179 + $0x38] sm:$0xff]
        %v289 = vld [vmem:[%s179 + $0x58] sm:$0xff]
        %v290 = vld [vmem:[%s179 + $0x78] sm:$0xff]
        %v291 = vld [vmem:[%s179 + $0x98] sm:$0xff]
        %v292 = vld [vmem:[%s179 + $0xb8] sm:$0xff]
        %v293 = vld [vmem:[%s179 + $0xd8] sm:$0xff]
        %v294 = vld [vmem:[%s179 + $0xf8] sm:$0xff]
        %v295 = vsel %vm230, 1, 0
        %vm296 = vcmp.eq.s32.totalorder %v295, 1
        %v297 = vsel %vm296, %v287, 0.0
        %v298 = vsel %vm296, %v288, 0.0
        %v299 = vsel %vm296, %v289, 0.0
        %v300 = vsel %vm296, %v290, 0.0
        %v301 = vsel %vm296, %v291, 0.0
        %v302 = vsel %vm296, %v292, 0.0
        %v303 = vsel %vm296, %v293, 0.0
        %v304 = vsel %vm296, %v294, 0.0
        %v305 = vsel %vm296, %v287, -inf
        %v306 = vsel %vm296, %v288, -inf
        %v307 = vsel %vm296, %v289, -inf
        %v308 = vsel %vm296, %v290, -inf
        %v309 = vsel %vm296, %v291, -inf
        %v310 = vsel %vm296, %v292, -inf
        %v311 = vsel %vm296, %v293, -inf
        %v312 = vsel %vm296, %v294, -inf
        %v313 = vadd.f32 %v271, %v297
        %v314 = vadd.f32 %v272, %v298
        %v315 = vadd.f32 %v273, %v299
        %v316 = vadd.f32 %v274, %v300
        %v317 = vadd.f32 %v275, %v301
        %v318 = vadd.f32 %v276, %v302
        %v319 = vadd.f32 %v277, %v303
        %v320 = vadd.f32 %v278, %v304
        %v321 = vmax.f32 %v279, %v305
        %v322 = vmax.f32 %v280, %v306
        %v323 = vmax.f32 %v281, %v307
        %v324 = vmax.f32 %v282, %v308
        %v325 = vmax.f32 %v283, %v309
        %v326 = vmax.f32 %v284, %v310
        %v327 = vmax.f32 %v285, %v311
        %v328 = vmax.f32 %v286, %v312
        %v329 = vld [vmem:[#allocation2] sm:$0xff]
        %v330 = vld [vmem:[#allocation2 + $0x8] sm:$0xff]
        %v331 = vld [vmem:[#allocation2 + $0x10] sm:$0xff]
        %v332 = vld [vmem:[#allocation2 + $0x18] sm:$0xff]
        %v333 = vld [vmem:[#allocation2 + $0x20] sm:$0xff]
        %v334 = vld [vmem:[#allocation2 + $0x28] sm:$0xff]
        %v335 = vld [vmem:[#allocation2 + $0x30] sm:$0xff]
        %v336 = vld [vmem:[#allocation2 + $0x38] sm:$0xff]
        %v337 = vadd.f32 %v329, %v313
        %v338 = vadd.f32 %v330, %v314
        %v339 = vadd.f32 %v331, %v315
        %v340 = vadd.f32 %v332, %v316
        %v341 = vadd.f32 %v333, %v317
        %v342 = vadd.f32 %v334, %v318
        %v343 = vadd.f32 %v335, %v319
        %v344 = vadd.f32 %v336, %v320
        %345 = vst [vmem:[#allocation2] sm:$0xff] %v337
        %346 = vst [vmem:[#allocation2 + $0x8] sm:$0xff] %v338
        %347 = vst [vmem:[#allocation2 + $0x10] sm:$0xff] %v339
        %348 = vst [vmem:[#allocation2 + $0x18] sm:$0xff] %v340
        %349 = vst [vmem:[#allocation2 + $0x20] sm:$0xff] %v341
        %350 = vst [vmem:[#allocation2 + $0x28] sm:$0xff] %v342
        %351 = vst [vmem:[#allocation2 + $0x30] sm:$0xff] %v343
        %352 = vst [vmem:[#allocation2 + $0x38] sm:$0xff] %v344
        %v353 = vld [vmem:[#allocation3] sm:$0xff]
        %v354 = vld [vmem:[#allocation3 + $0x8] sm:$0xff]
        %v355 = vld [vmem:[#allocation3 + $0x10] sm:$0xff]
        %v356 = vld [vmem:[#allocation3 + $0x18] sm:$0xff]
        %v357 = vld [vmem:[#allocation3 + $0x20] sm:$0xff]
        %v358 = vld [vmem:[#allocation3 + $0x28] sm:$0xff]
        %v359 = vld [vmem:[#allocation3 + $0x30] sm:$0xff]
        %v360 = vld [vmem:[#allocation3 + $0x38] sm:$0xff]
        %v361 = vmax.f32 %v353, %v321
        %v362 = vmax.f32 %v354, %v322
        %v363 = vmax.f32 %v355, %v323
        %v364 = vmax.f32 %v356, %v324
        %v365 = vmax.f32 %v357, %v325
        %v366 = vmax.f32 %v358, %v326
        %v367 = vmax.f32 %v359, %v327
        %v368 = vmax.f32 %v360, %v328
        %369 = vst [vmem:[#allocation3] sm:$0xff] %v361
        %370 = vst [vmem:[#allocation3 + $0x8] sm:$0xff] %v362
        %371 = vst [vmem:[#allocation3 + $0x10] sm:$0xff] %v363
        %372 = vst [vmem:[#allocation3 + $0x18] sm:$0xff] %v364
        %373 = vst [vmem:[#allocation3 + $0x20] sm:$0xff] %v365
        %374 = vst [vmem:[#allocation3 + $0x28] sm:$0xff] %v366
        %375 = vst [vmem:[#allocation3 + $0x30] sm:$0xff] %v367
        %376 = vst [vmem:[#allocation3 + $0x38] sm:$0xff] %v368
        // Predicated region
        $region41: #{tpu_custom_call.1} parent=31 // pred_check
          %p377 = pneg %p208
        $region42: #{tpu_custom_call.1} parent=31 // pred_check_branch
          %379 = sbr.rel (%p377) target = $region44
        $region43: #{tpu_custom_call.1} parent=31 // pred_region
          %v380 = vld [vmem:[#allocation2] sm:$0xff]
          %v381 = vld [vmem:[#allocation2 + $0x8] sm:$0xff]
          %v382 = vld [vmem:[#allocation2 + $0x10] sm:$0xff]
          %v383 = vld [vmem:[#allocation2 + $0x18] sm:$0xff]
          %v384 = vld [vmem:[#allocation2 + $0x20] sm:$0xff]
          %v385 = vld [vmem:[#allocation2 + $0x28] sm:$0xff]
          %v386 = vld [vmem:[#allocation2 + $0x30] sm:$0xff]
          %v387 = vld [vmem:[#allocation2 + $0x38] sm:$0xff]
          %388 = vadd.xlane.f32.xlu0 %v380
          %v389 = vpop.xlane.xlu0 %388
          %390 = vadd.xlane.f32.xlu0 %v381
          %v391 = vpop.xlane.xlu0 %390
          %392 = vadd.xlane.f32.xlu0 %v382
          %v393 = vpop.xlane.xlu0 %392
          %394 = vadd.xlane.f32.xlu0 %v383
          %v395 = vpop.xlane.xlu0 %394
          %396 = vadd.xlane.f32.xlu0 %v384
          %v397 = vpop.xlane.xlu0 %396
          %398 = vadd.xlane.f32.xlu0 %v385
          %v399 = vpop.xlane.xlu0 %398
          %400 = vadd.xlane.f32.xlu0 %v386
          %v401 = vpop.xlane.xlu0 %400
          %402 = vadd.xlane.f32.xlu0 %v387
          %v403 = vpop.xlane.xlu0 %402
          %v404 = vmul.f32 %v389, 0.0025
          %v405 = vmul.f32 %v391, 0.0025
          %v406 = vmul.f32 %v393, 0.0025
          %v407 = vmul.f32 %v395, 0.0025
          %v408 = vmul.f32 %v397, 0.0025
          %v409 = vmul.f32 %v399, 0.0025
          %v410 = vmul.f32 %v401, 0.0025
          %v411 = vmul.f32 %v403, 0.0025
          %v412 = vld [vmem:[#allocation3] sm:$0xff]
          %v413 = vld [vmem:[#allocation3 + $0x8] sm:$0xff]
          %v414 = vld [vmem:[#allocation3 + $0x10] sm:$0xff]
          %v415 = vld [vmem:[#allocation3 + $0x18] sm:$0xff]
          %v416 = vld [vmem:[#allocation3 + $0x20] sm:$0xff]
          %v417 = vld [vmem:[#allocation3 + $0x28] sm:$0xff]
          %v418 = vld [vmem:[#allocation3 + $0x30] sm:$0xff]
          %v419 = vld [vmem:[#allocation3 + $0x38] sm:$0xff]
          %420 = vmax.xlane.f32.xlu0 %v412
          %v421 = vpop.xlane.xlu0 %420
          %422 = vmax.xlane.f32.xlu0 %v413
          %v423 = vpop.xlane.xlu0 %422
          %424 = vmax.xlane.f32.xlu0 %v414
          %v425 = vpop.xlane.xlu0 %424
          %426 = vmax.xlane.f32.xlu0 %v415
          %v427 = vpop.xlane.xlu0 %426
          %428 = vmax.xlane.f32.xlu0 %v416
          %v429 = vpop.xlane.xlu0 %428
          %430 = vmax.xlane.f32.xlu0 %v417
          %v431 = vpop.xlane.xlu0 %430
          %432 = vmax.xlane.f32.xlu0 %v418
          %v433 = vpop.xlane.xlu0 %432
          %434 = vmax.xlane.f32.xlu0 %v419
          %v435 = vpop.xlane.xlu0 %434
          %vm436 = vcmask 7168
          %v437 = vsel %vm436, %v404, %v421
          %v438 = vsel %vm436, %v405, %v423
          %v439 = vsel %vm436, %v406, %v425
          %v440 = vsel %vm436, %v407, %v427
          %v441 = vsel %vm436, %v408, %v429
          %v442 = vsel %vm436, %v409, %v431
          %v443 = vsel %vm436, %v410, %v433
          %v444 = vsel %vm436, %v411, %v435
          %v445 = vld [vmem:[%s1] sm:$0xf]
          %vm446 = vcmask 523264
          %v448 = vsel %vm446, %v445, 0
          %450 = vmatprep.subr.mxu0 0.0
          %451 = vmatpush1.msra.mxu0 %v437
          %452 = vmatprep.subr.mxu0 0.0
          %453 = vmatpush1.msra.mxu0 %v438
          %454 = vmatprep.subr.mxu0 0.0
          %455 = vmatpush1.msra.mxu0 %v439
          %456 = vmatprep.subr.mxu0 0.0
          %457 = vmatpush1.msra.mxu0 %v440
          %458 = vmatprep.subr.mxu0 0.0
          %459 = vmatpush1.msra.mxu0 %v441
          %460 = vmatprep.subr.mxu0 0.0
          %461 = vmatpush1.msra.mxu0 %v442
          %462 = vmatprep.subr.mxu0 0.0
          %463 = vmatpush1.msra.mxu0 %v443
          %464 = vmatprep.subr.mxu0 0.0
          %465 = vmatpush1.msra.mxu0 %v444
          %466 = vmatprep.subr.mxu0 0.0
          %467 = vmatpush1.msra.mxu0 0.0
          %468 = vmatprep.subr.mxu0 0.0
          %469 = vmatpush1.msra.mxu0 0.0
          %470 = vmatprep.subr.mxu0 0.0
          %471 = vmatpush1.msra.mxu0 0.0
          %472 = vmatprep.subr.mxu0 0.0
          %473 = vmatpush1.msra.mxu0 0.0
          %474 = vmatprep.subr.mxu0 0.0
          %475 = vmatpush1.msra.mxu0 0.0
          %476 = vmatprep.subr.mxu0 0.0
          %477 = vmatpush1.msra.mxu0 0.0
          %478 = vmatprep.subr.mxu0 0.0
          %479 = vmatpush1.msra.mxu0 0.0
          %480 = vmatprep.subr.mxu0 0.0
          %481 = vmatpush1.msra.mxu0 0.0
          %482 = vmatprep.subr.mxu0 0.0
          %483 = vmatpush1.msra.mxu0 0.0
          %484 = vmatprep.subr.mxu0 0.0
          %485 = vmatpush1.msra.mxu0 0.0
          %486 = vmatprep.subr.mxu0 0.0
          %487 = vmatpush1.msra.mxu0 0.0
          %488 = vmatprep.subr.mxu0 0.0
          %489 = vmatpush1.msra.mxu0 0.0
          %490 = vmatprep.subr.mxu0 0.0
          %491 = vmatpush1.msra.mxu0 0.0
          %492 = vmatprep.subr.mxu0 0.0
          %493 = vmatpush1.msra.mxu0 0.0
          %494 = vmatprep.subr.mxu0 0.0
          %495 = vmatpush1.msra.mxu0 0.0
          %496 = vmatprep.subr.mxu0 0.0
          %497 = vmatpush1.msra.mxu0 0.0
          %498 = vmatprep.subr.mxu0 0.0
          %499 = vmatpush1.msra.mxu0 0.0
          %500 = vmatprep.subr.mxu0 0.0
          %501 = vmatpush1.msra.mxu0 0.0
          %502 = vmatprep.subr.mxu0 0.0
          %503 = vmatpush1.msra.mxu0 0.0
          %504 = vmatprep.subr.mxu0 0.0
          %505 = vmatpush1.msra.mxu0 0.0
          %506 = vmatprep.subr.mxu0 0.0
          %507 = vmatpush1.msra.mxu0 0.0
          %508 = vmatprep.subr.mxu0 0.0
          %509 = vmatpush1.msra.mxu0 0.0
          %510 = vmatprep.subr.mxu0 0.0
          %511 = vmatpush1.msra.mxu0 0.0
          %512 = vmatprep.subr.mxu0 0.0
          %513 = vmatpush1.msra.mxu0 0.0
          %514 = vmatprep.mubr.f32.mxu0 0.0
          %515 = vmatmul.mubr.f32.gmra.mrb[0].mxu0 %v448
          %v516 = vpop.f32.mrb[0].mxu0
          %v517 = vadd.f32 0.0, %v516
          %v518 = vpop.f32.mrb[0].mxu0
          %519 = vdwg.mxu0
          %v520 = vmax.f32 %v517, 0.0
          %v521 = vld [vmem:[%s2] sm:$0xff]
          %v522 = vld [vmem:[%s2 + $0x8] sm:$0xff]
          %v523 = vld [vmem:[%s2 + $0x10] sm:$0xff]
          %v524 = vld [vmem:[%s2 + $0x18] sm:$0xff]
          %v525 = vld [vmem:[%s2 + $0x20] sm:$0xff]
          %v526 = vld [vmem:[%s2 + $0x28] sm:$0xff]
          %v527 = vld [vmem:[%s2 + $0x30] sm:$0xff]
          %v528 = vld [vmem:[%s2 + $0x38] sm:$0xff]
          %vm529 = vcmask 31744
          %v531 = vsel %vm529, %v521, 0
          %v534 = vsel %vm529, %v522, 0
          %v537 = vsel %vm529, %v523, 0
          %v540 = vsel %vm529, %v524, 0
          %v543 = vsel %vm529, %v525, 0
          %v546 = vsel %vm529, %v526, 0
          %v549 = vsel %vm529, %v527, 0
          %v552 = vsel %vm529, %v528, 0
          %vm554 = vcmask 1043456
          %v556 = vsel %vm554, %v520, 0
          %558 = vmatprep.subr.mxu0 0.0
          %559 = vmatpush1.msra.mxu0 %v556
          %560 = vmatprep.subr.mxu0 0.0
          %561 = vmatpush1.msra.mxu0 0.0
          %562 = vmatprep.subr.mxu0 0.0
          %563 = vmatpush1.msra.mxu0 0.0
          %564 = vmatprep.subr.mxu0 0.0
          %565 = vmatpush1.msra.mxu0 0.0
          %566 = vmatprep.subr.mxu0 0.0
          %567 = vmatpush1.msra.mxu0 0.0
          %568 = vmatprep.subr.mxu0 0.0
          %569 = vmatpush1.msra.mxu0 0.0
          %570 = vmatprep.subr.mxu0 0.0
          %571 = vmatpush1.msra.mxu0 0.0
          %572 = vmatprep.subr.mxu0 0.0
          %573 = vmatpush1.msra.mxu0 0.0
          %574 = vmatprep.subr.mxu0 0.0
          %575 = vmatpush1.msra.mxu0 0.0
          %576 = vmatprep.subr.mxu0 0.0
          %577 = vmatpush1.msra.mxu0 0.0
          %578 = vmatprep.subr.mxu0 0.0
          %579 = vmatpush1.msra.mxu0 0.0
          %580 = vmatprep.subr.mxu0 0.0
          %581 = vmatpush1.msra.mxu0 0.0
          %582 = vmatprep.subr.mxu0 0.0
          %583 = vmatpush1.msra.mxu0 0.0
          %584 = vmatprep.subr.mxu0 0.0
          %585 = vmatpush1.msra.mxu0 0.0
          %586 = vmatprep.subr.mxu0 0.0
          %587 = vmatpush1.msra.mxu0 0.0
          %588 = vmatprep.subr.mxu0 0.0
          %589 = vmatpush1.msra.mxu0 0.0
          %590 = vmatprep.subr.mxu0 0.0
          %591 = vmatpush1.msra.mxu0 0.0
          %592 = vmatprep.subr.mxu0 0.0
          %593 = vmatpush1.msra.mxu0 0.0
          %594 = vmatprep.subr.mxu0 0.0
          %595 = vmatpush1.msra.mxu0 0.0
          %596 = vmatprep.subr.mxu0 0.0
          %597 = vmatpush1.msra.mxu0 0.0
          %598 = vmatprep.subr.mxu0 0.0
          %599 = vmatpush1.msra.mxu0 0.0
          %600 = vmatprep.subr.mxu0 0.0
          %601 = vmatpush1.msra.mxu0 0.0
          %602 = vmatprep.subr.mxu0 0.0
          %603 = vmatpush1.msra.mxu0 0.0
          %604 = vmatprep.subr.mxu0 0.0
          %605 = vmatpush1.msra.mxu0 0.0
          %606 = vmatprep.subr.mxu0 0.0
          %607 = vmatpush1.msra.mxu0 0.0
          %608 = vmatprep.subr.mxu0 0.0
          %609 = vmatpush1.msra.mxu0 0.0
          %610 = vmatprep.subr.mxu0 0.0
          %611 = vmatpush1.msra.mxu0 0.0
          %612 = vmatprep.subr.mxu0 0.0
          %613 = vmatpush1.msra.mxu0 0.0
          %614 = vmatprep.subr.mxu0 0.0
          %615 = vmatpush1.msra.mxu0 0.0
          %616 = vmatprep.subr.mxu0 0.0
          %617 = vmatpush1.msra.mxu0 0.0
          %618 = vmatprep.subr.mxu0 0.0
          %619 = vmatpush1.msra.mxu0 0.0
          %620 = vmatprep.subr.mxu0 0.0
          %621 = vmatpush1.msra.mxu0 0.0
          %622 = vmatprep.mubr.f32.mxu0 0.0
          %623 = vmatmul.mubr.f32.gmra.mrb[0].mxu0 %v531
          %v624 = vpop.f32.mrb[0].mxu0
          %v625 = vadd.f32 0.0, %v624
          %v626 = vpop.f32.mrb[0].mxu0
          %627 = vmatprep.mubr.f32.mxu0 0.0
          %628 = vmatmul.mubr.f32.gmra.mrb[0].mxu0 %v534
          %v629 = vpop.f32.mrb[0].mxu0
          %v630 = vadd.f32 0.0, %v629
          %v631 = vpop.f32.mrb[0].mxu0
          %632 = vmatprep.mubr.f32.mxu0 0.0
          %633 = vmatmul.mubr.f32.gmra.mrb[0].mxu0 %v537
          %v634 = vpop.f32.mrb[0].mxu0
          %v635 = vadd.f32 0.0, %v634
          %v636 = vpop.f32.mrb[0].mxu0
          %637 = vmatprep.mubr.f32.mxu0 0.0
          %638 = vmatmul.mubr.f32.gmra.mrb[0].mxu0 %v540
          %v639 = vpop.f32.mrb[0].mxu0
          %v640 = vadd.f32 0.0, %v639
          %v641 = vpop.f32.mrb[0].mxu0
          %642 = vmatprep.mubr.f32.mxu0 0.0
          %643 = vmatmul.mubr.f32.gmra.mrb[0].mxu0 %v543
          %v644 = vpop.f32.mrb[0].mxu0
          %v645 = vadd.f32 0.0, %v644
          %v646 = vpop.f32.mrb[0].mxu0
          %647 = vmatprep.mubr.f32.mxu0 0.0
          %648 = vmatmul.mubr.f32.gmra.mrb[0].mxu0 %v546
          %v649 = vpop.f32.mrb[0].mxu0
          %v650 = vadd.f32 0.0, %v649
          %v651 = vpop.f32.mrb[0].mxu0
          %652 = vmatprep.mubr.f32.mxu0 0.0
          %653 = vmatmul.mubr.f32.gmra.mrb[0].mxu0 %v549
          %v654 = vpop.f32.mrb[0].mxu0
          %v655 = vadd.f32 0.0, %v654
          %v656 = vpop.f32.mrb[0].mxu0
          %657 = vmatprep.mubr.f32.mxu0 0.0
          %658 = vmatmul.mubr.f32.gmra.mrb[0].mxu0 %v552
          %v659 = vpop.f32.mrb[0].mxu0
          %v660 = vadd.f32 0.0, %v659
          %v661 = vpop.f32.mrb[0].mxu0
          %662 = vdwg.mxu0
          %671 = vrot.lane.b32.xlu0 %v625, 127
          %v672 = vpop.permute.xlu0 %671
          %673 = vrot.lane.b32.xlu0 %v630, 127
          %v674 = vpop.permute.xlu0 %673
          %675 = vrot.lane.b32.xlu0 %v635, 127
          %v676 = vpop.permute.xlu0 %675
          %677 = vrot.lane.b32.xlu0 %v640, 127
          %v678 = vpop.permute.xlu0 %677
          %679 = vrot.lane.b32.xlu0 %v645, 127
          %v680 = vpop.permute.xlu0 %679
          %681 = vrot.lane.b32.xlu0 %v650, 127
          %v682 = vpop.permute.xlu0 %681
          %683 = vrot.lane.b32.xlu0 %v655, 127
          %v684 = vpop.permute.xlu0 %683
          %685 = vrot.lane.b32.xlu0 %v660, 127
          %v686 = vpop.permute.xlu0 %685
          %v695 = vadd.f32 %v625, %v672
          %v696 = vadd.f32 %v630, %v674
          %v697 = vadd.f32 %v635, %v676
          %v698 = vadd.f32 %v640, %v678
          %v699 = vadd.f32 %v645, %v680
          %v700 = vadd.f32 %v650, %v682
          %v701 = vadd.f32 %v655, %v684
          %v702 = vadd.f32 %v660, %v686
          %v703 = vxor.u32 %v695, 2147483648
          %v704 = vxor.u32 %v696, 2147483648
          %v705 = vxor.u32 %v697, 2147483648
          %v706 = vxor.u32 %v698, 2147483648
          %v707 = vxor.u32 %v699, 2147483648
          %v708 = vxor.u32 %v700, 2147483648
          %v709 = vxor.u32 %v701, 2147483648
          %v710 = vxor.u32 %v702, 2147483648
          %v711 = vmul.f32 %v703, 1.442695
          %v712 = vpow.pop %v711
          %v713 = vmul.f32 %v704, 1.442695
          %v714 = vpow.pop %v713
          %v715 = vmul.f32 %v705, 1.442695
          %v716 = vpow.pop %v715
          %v717 = vmul.f32 %v706, 1.442695
          %v718 = vpow.pop %v717
          %v719 = vmul.f32 %v707, 1.442695
          %v720 = vpow.pop %v719
          %v721 = vmul.f32 %v708, 1.442695
          %v722 = vpow.pop %v721
          %v723 = vmul.f32 %v709, 1.442695
          %v724 = vpow.pop %v723
          %v725 = vmul.f32 %v710, 1.442695
          %v726 = vpow.pop %v725
          %v727 = vadd.f32 %v712, 1.0
          %v728 = vadd.f32 %v714, 1.0
          %v729 = vadd.f32 %v716, 1.0
          %v730 = vadd.f32 %v718, 1.0
          %v731 = vadd.f32 %v720, 1.0
          %v732 = vadd.f32 %v722, 1.0
          %v733 = vadd.f32 %v724, 1.0
          %v734 = vadd.f32 %v726, 1.0
          %v735 = vrcp.pop %v727
          %v736 = vmul.f32 1.0, %v735
          %v737 = vrcp.pop %v728
          %v738 = vmul.f32 1.0, %v737
          %v739 = vrcp.pop %v729
          %v740 = vmul.f32 1.0, %v739
          %v741 = vrcp.pop %v730
          %v742 = vmul.f32 1.0, %v741
          %v743 = vrcp.pop %v731
          %v744 = vmul.f32 1.0, %v743
          %v745 = vrcp.pop %v732
          %v746 = vmul.f32 1.0, %v745
          %v747 = vrcp.pop %v733
          %v748 = vmul.f32 1.0, %v747
          %v749 = vrcp.pop %v734
          %v750 = vmul.f32 1.0, %v749
          %751 = vst.msk [vmem:[%s207] sm:$0xff] %vm436, %v736
          %752 = vst.msk [vmem:[%s207 + $0x8] sm:$0xff] %vm436, %v738
          %753 = vst.msk [vmem:[%s207 + $0x10] sm:$0xff] %vm436, %v740
          %754 = vst.msk [vmem:[%s207 + $0x18] sm:$0xff] %vm436, %v742
          %755 = vst.msk [vmem:[%s207 + $0x20] sm:$0xff] %vm436, %v744
          %756 = vst.msk [vmem:[%s207 + $0x28] sm:$0xff] %vm436, %v746
          %757 = vst.msk [vmem:[%s207 + $0x30] sm:$0xff] %vm436, %v748
          %758 = vst.msk [vmem:[%s207 + $0x38] sm:$0xff] %vm436, %v750
        $region44: #{tpu_custom_call.1} parent=31 // pred_fallthru
          _
        %p759 = scmp.lt.s32.totalorder %s21, 1
        %s760 = scalar_select %p759, %s21, 1
        %s761 = smul.addr %s760, 8
        %s762 = smul.addr %s761, 8
        %s763 = scalar_lea.vmem %s3, %s762
        // Predicated region
        $region45: #{tpu_custom_call.1} parent=31 // pred_check
          %p764 = pneg %p117
        $region46: #{tpu_custom_call.1} parent=31 // pred_check_branch
          %766 = sbr.rel (%p764) target = $region48
        $region47: #{tpu_custom_call.1} parent=31 // pred_region
          _
        $region48: #{tpu_custom_call.1} parent=31 // pred_fallthru
          _
      $region32: #{tpu_custom_call.1} parent=5 // pred_fallthru
        _
      %p767 = scmp.le.s32.totalorder 2, %s12
      // Predicated region
      $region49: #{tpu_custom_call.1} parent=5 // pred_check
        %p768 = pneg %p767
      $region50: #{tpu_custom_call.1} parent=5 // pred_check_branch
        %770 = sbr.rel (%p768) target = $region52
      $region51: #{tpu_custom_call.1} parent=5 // pred_region
        %s771 = ssub.s32 %s12, 2
        // Predicated region
        $region53: #{tpu_custom_call.1} parent=51 // pred_check
          %p772 = pneg %p123
        $region54: #{tpu_custom_call.1} parent=51 // pred_check_branch
          %774 = sbr.rel (%p772) target = $region56
        $region55: #{tpu_custom_call.1} parent=51 // pred_region
          %p775 = scmp.lt.s32.totalorder %s23, 1
          %s776 = scalar_select %p775, %s23, 1
          %s777 = smul.addr %s776, 8
          %s778 = smul.addr %s777, 8
          %s779 = scalar_lea.vmem %s3, %s778
        $region56: #{tpu_custom_call.1} parent=51 // pred_fallthru
          _
      $region52: #{tpu_custom_call.1} parent=5 // pred_fallthru
        _
    $region6: #{tpu_custom_call.1} parent=1 // loop_footer
      %s16 = sadd.s32 1, %s12
    $region7: #{tpu_custom_call.1} parent=1 // loop_footer_branch
      %11 = sbr.rel target = $region3
    $region8: #{tpu_custom_call.1} parent=1 // loop_exit
      _
    %780 = vsyncpa [#allocation5], 1
    %s781 = scalar_lea.sflag [#allocation5], 1
    %782 = vsyncpa %s781, 1

</llo_original>
